<compile_context>
chip_gen: v5e
topology: v5e:2x2
jax: 0.10.0
libtpu: 0.0.40
codegen_flags: <defaults>
</compile_context>

<pallas_src>
from functools import partial

import jax
import jax.numpy as jnp
from jax.experimental import pallas as pl
from jax.experimental.pallas import tpu as pltpu


def _round_up(x, m):
    return ((x + m - 1) // m) * m


def _logits_kernel(x_ref, w_ref, b_ref, o_ref, acc_ref):
    # x_ref: (TM, TK) bf16, w_ref: (TK, TN) bf16, b_ref: (1, TN) f32,
    # o_ref: (TM, TN) f32, acc_ref: (TM, TN) f32 scratch.
    k = pl.program_id(2)

    @pl.when(k == 0)
    def _init():
        acc_ref[...] = jnp.zeros_like(acc_ref)

    acc_ref[...] += jnp.dot(
        x_ref[...], w_ref[...], preferred_element_type=jnp.float32
    )

    @pl.when(k == pl.num_programs(2) - 1)
    def _store():
        o_ref[...] = (acc_ref[...] + b_ref[...]).astype(o_ref.dtype)


def vocab_projection(x_2d, w, b):
    """x_2d: (R, H), w: (H, V), b: (V,) -> (R, V) float32 logits."""
    R, H = x_2d.shape
    H2, V = w.shape
    assert H == H2

    # Tile selection: lane-dense N tiles (>=512 when vocab allows), M tiles
    # of up to 256 rows, K tiled at 512 when the hidden dim is large.
    tm = 256 if R >= 256 else _round_up(max(R, 1), 16)
    tn = 512 if V >= 512 else _round_up(V, 128)
    tk = 512 if H >= 512 else H  # small H: single full-width K block

    R_pad = _round_up(R, tm)
    V_pad = _round_up(V, tn)
    K_pad = _round_up(H, tk)

    # Pad (zeros contribute nothing to the reduction) and cast streams to bf16.
    x_p = jnp.zeros((R_pad, K_pad), jnp.bfloat16).at[:R, :H].set(
        x_2d.astype(jnp.bfloat16))
    w_p = jnp.zeros((K_pad, V_pad), jnp.bfloat16).at[:H, :V].set(
        w.astype(jnp.bfloat16))
    b_p = jnp.zeros((1, V_pad), jnp.float32).at[:, :V].set(
        b.astype(jnp.float32)[None, :])

    grid = (R_pad // tm, V_pad // tn, K_pad // tk)

    # Explicit per-step VMEM budget (double-buffered inputs/outputs + f32
    # accumulator), with headroom; capped so it also fits v7x's 64 MiB VMEM.
    per_step = 2 * (tm * tk * 2 + tk * tn * 2 + tm * tn * 4) + tm * tn * 4 + 2 * tn * 4
    vmem_limit = int(min(max(2 * per_step, 16 * 1024 * 1024), 48 * 1024 * 1024))

    out = pl.pallas_call(
        _logits_kernel,
        out_shape=jax.ShapeDtypeStruct((R_pad, V_pad), jnp.float32),
        grid_spec=pltpu.PrefetchScalarGridSpec(
            num_scalar_prefetch=0,
            grid=grid,
            in_specs=[
                pl.BlockSpec((tm, tk), lambda i, j, k: (i, k)),
                pl.BlockSpec((tk, tn), lambda i, j, k: (k, j)),
                pl.BlockSpec((1, tn), lambda i, j, k: (0, j)),
            ],
            out_specs=pl.BlockSpec((tm, tn), lambda i, j, k: (i, j)),
            scratch_shapes=[pltpu.VMEM((tm, tn), jnp.float32)],
        ),
        compiler_params=pltpu.CompilerParams(
            dimension_semantics=("parallel", "parallel", "arbitrary"),
            vmem_limit_bytes=vmem_limit,
        ),
    )(x_p, w_p, b_p)

    return out[:R, :V]


@partial(jax.jit, static_argnums=(4,))
def _greedy_generate(embedding, w_out, b_out, init_ids, max_new_tokens):
    """Greedy decode with a fixed-size id buffer (no retracing, last-token-only logits)."""
    B, T = init_ids.shape
    total = T + max_new_tokens
    buf = jnp.zeros((B, total), init_ids.dtype).at[:, :T].set(init_ids)

    def step(i, buf):
        cur = T + i  # position being written this step
        last_ids = jax.lax.dynamic_slice(buf, (0, cur - 1), (B, 1))[:, 0]
        x = jnp.take(embedding, last_ids, axis=0)            # (B, H)
        logits = vocab_projection(x, w_out, b_out)            # (B, V)
        nxt = jnp.argmax(logits, axis=-1).astype(buf.dtype)   # (B,)
        return jax.lax.dynamic_update_slice(buf, nxt[:, None], (0, cur))

    return jax.lax.fori_loop(0, max_new_tokens, step, buf)


class PallasDecoder:
    """Concrete decoder implementing the AbstractDecoder interface in JAX/Pallas."""

    def __init__(self, vocab_size=128, hidden=32, seed=0):
        self.vocab_size = vocab_size
        self.hidden = hidden
        k = jax.random.PRNGKey(seed)
        k_emb, k_w, k_b = jax.random.split(k, 3)
        # Deterministic synthetic parameters (the ABC defines none).
        self.embedding = jax.random.normal(k_emb, (vocab_size, hidden), jnp.float32) * 0.02
        self.w_out = jax.random.normal(k_w, (hidden, vocab_size), jnp.float32) * 0.02
        self.b_out = jax.random.normal(k_b, (vocab_size,), jnp.float32) * 0.02

    def forward(self, input_ids):
        """input_ids: (B, T) int32 -> logits (B, T, V) float32."""
        B, T = input_ids.shape
        x = jnp.take(self.embedding, input_ids.reshape(-1), axis=0)  # (B*T, H) glue gather
        logits_2d = vocab_projection(x, self.w_out, self.b_out)
        return logits_2d.reshape(B, T, self.vocab_size)

    def generate(self, input_ids, max_new_tokens, **generation_kwargs):
        """Greedy decode: append argmax of the last-position logits each step."""
        return _greedy_generate(
            self.embedding, self.w_out, self.b_out, input_ids, int(max_new_tokens)
        )


if __name__ == "__main__":
    key = jax.random.PRNGKey(0)
    B, T, V, H = 2, 8, 128, 32
    input_ids = jax.random.randint(key, (B, T), 0, V, dtype=jnp.int32)

    model = PallasDecoder(vocab_size=V, hidden=H, seed=0)

    logits = model.forward(input_ids)
    jax.block_until_ready(logits)

    # Reference check against plain JAX (f32); kernel streams x/w in bf16, so
    # allow for bf16 rounding on the inputs.
    x_ref = jnp.take(model.embedding, input_ids.reshape(-1), axis=0)
    ref = (x_ref @ model.w_out + model.b_out).reshape(B, T, V)
    assert logits.shape == (B, T, V)
    assert jnp.allclose(logits, ref, atol=1e-3, rtol=1e-2), (
        float(jnp.max(jnp.abs(logits - ref)))
    )

    # Exercise the (jitted, fixed-buffer) generate path.
    out_ids = model.generate(input_ids, max_new_tokens=4)
    jax.block_until_ready(out_ids)
    assert out_ids.shape == (B, T + 4)
    # Prefix must be preserved.
    assert jnp.array_equal(out_ids[:, :T], input_ids)

    print("KERNEL_OK")
</pallas_src>

<mosaic_0001>
module attributes {stable_mosaic.version = 11 : i64} {
  func.func @_logits_kernel(%arg0: i32, %arg1: i32, %arg2: i32, %arg3: memref<16x32xbf16, #tpu.memory_space<vmem>>, %arg4: memref<32x128xbf16, #tpu.memory_space<vmem>>, %arg5: memref<1x128xf32, #tpu.memory_space<vmem>>, %arg6: memref<16x128xf32, #tpu.memory_space<vmem>>, %arg7: memref<16x128xf32, #tpu.memory_space<vmem>>) attributes {dimension_semantics = [#tpu.dimension_semantics<parallel>, #tpu.dimension_semantics<parallel>, #tpu.dimension_semantics<arbitrary>], iteration_bounds = array<i64: 1, 1, 1>, scalar_prefetch = 0 : i64, scratch_operands = 1 : i64, tpu.core_type = #tpu.core_type<tc>, window_params = [{transform_indices = @transform_0, window_bounds = array<i64: 16, 32>}, {transform_indices = @transform_1, window_bounds = array<i64: 32, 128>}, {transform_indices = @transform_2, window_bounds = array<i64: 1, 128>}, {transform_indices = @transform_3, window_bounds = array<i64: 16, 128>}]} {
    %c0_i32 = arith.constant 0 : i32
    %0 = arith.cmpi eq, %arg2, %c0_i32 : i32
    %1 = arith.extui %0 : i1 to i32
    %c0_i32_0 = arith.constant 0 : i32
    %2 = arith.cmpi ne, %1, %c0_i32_0 : i32
    scf.if %2 {
      %cst_10 = arith.constant 0.000000e+00 : f32
      %12 = vector.broadcast %cst_10 : f32 to vector<16x128xf32>
      %c0_11 = arith.constant 0 : index
      %c0_12 = arith.constant 0 : index
      %13 = vector.load %arg7[%c0_11, %c0_12] : memref<16x128xf32, #tpu.memory_space<vmem>>, vector<16x128xf32>
      tpu.vector_store %arg7[%c0_11, %c0_12], %12 {strides = array<i32>} : memref<16x128xf32, #tpu.memory_space<vmem>>, vector<16x128xf32>,
    } else {
    }
    %c0 = arith.constant 0 : index
    %c0_1 = arith.constant 0 : index
    %3 = vector.load %arg7[%c0, %c0_1] : memref<16x128xf32, #tpu.memory_space<vmem>>, vector<16x128xf32>
    %c0_2 = arith.constant 0 : index
    %c0_3 = arith.constant 0 : index
    %4 = vector.load %arg3[%c0_2, %c0_3] : memref<16x32xbf16, #tpu.memory_space<vmem>>, vector<16x32xbf16>
    %c0_4 = arith.constant 0 : index
    %c0_5 = arith.constant 0 : index
    %5 = vector.load %arg4[%c0_4, %c0_5] : memref<32x128xbf16, #tpu.memory_space<vmem>>, vector<32x128xbf16>
    %cst = arith.constant dense<0.000000e+00> : vector<16x128xf32>
    %6 = tpu.matmul %4, %5, %cst {dimension_numbers = #tpu.dot_dimension_numbers<[1], [0], [0], [1], [0, 0, 1, 1], [], []>} : vector<16x32xbf16>, vector<32x128xbf16>, vector<16x128xf32> -> vector<16x128xf32>
    %7 = arith.addf %3, %6 : vector<16x128xf32>
    %c0_6 = arith.constant 0 : index
    %c0_7 = arith.constant 0 : index
    %8 = vector.load %arg7[%c0_6, %c0_7] : memref<16x128xf32, #tpu.memory_space<vmem>>, vector<16x128xf32>
    tpu.vector_store %arg7[%c0_6, %c0_7], %7 {strides = array<i32>} : memref<16x128xf32, #tpu.memory_space<vmem>>, vector<16x128xf32>,
    %c0_i32_8 = arith.constant 0 : i32
    %9 = arith.cmpi eq, %arg2, %c0_i32_8 : i32
    %10 = arith.extui %9 : i1 to i32
    %c0_i32_9 = arith.constant 0 : i32
    %11 = arith.cmpi ne, %10, %c0_i32_9 : i32
    scf.if %11 {
      %c0_10 = arith.constant 0 : index
      %c0_11 = arith.constant 0 : index
      %12 = vector.load %arg7[%c0_10, %c0_11] : memref<16x128xf32, #tpu.memory_space<vmem>>, vector<16x128xf32>
      %c0_12 = arith.constant 0 : index
      %c0_13 = arith.constant 0 : index
      %13 = vector.load %arg5[%c0_12, %c0_13] : memref<1x128xf32, #tpu.memory_space<vmem>>, vector<1x128xf32>
      %14 = vector.broadcast %13 : vector<1x128xf32> to vector<16x128xf32>
      %15 = arith.addf %12, %14 : vector<16x128xf32>
      %c0_14 = arith.constant 0 : index
      %c0_15 = arith.constant 0 : index
      %16 = vector.load %arg6[%c0_14, %c0_15] : memref<16x128xf32, #tpu.memory_space<vmem>>, vector<16x128xf32>
      tpu.vector_store %arg6[%c0_14, %c0_15], %15 {strides = array<i32>} : memref<16x128xf32, #tpu.memory_space<vmem>>, vector<16x128xf32>,
    } else {
    }
    return
  }
  func.func @transform_0(%arg0: i32, %arg1: i32, %arg2: i32) -> (i32, i32) {
    %c0_i32 = arith.constant 0 : i32
    return %arg0, %arg2 : i32, i32
  }
  func.func @transform_1(%arg0: i32, %arg1: i32, %arg2: i32) -> (i32, i32) {
    %c0_i32 = arith.constant 0 : i32
    return %arg2, %arg1 : i32, i32
  }
  func.func @transform_2(%arg0: i32, %arg1: i32, %arg2: i32) -> (i32, i32) {
    %c0_i32 = arith.constant 0 : i32
    %c0_i32_0 = arith.constant 0 : i32
    return %c0_i32, %arg1 : i32, i32
  }
  func.func @transform_3(%arg0: i32, %arg1: i32, %arg2: i32) -> (i32, i32) {
    %c0_i32 = arith.constant 0 : i32
    return %arg0, %arg1 : i32, i32
  }
}

</mosaic_0001>

<llo_original>
// kernel: tpu_custom_call.1
$region0: #{tpu_custom_call.1}
  #allocation0 [shape = 'u32[]', space=smem, size = 0x4, offset = 0x4, fixed_abs, tag = 'smem constant byte address 0x4 - core index']
  #allocation1 [shape = 'u32[72,128]{1,0:T(1,128)}', space=vmem, size = 0x9000, scoped, tag = 'internal scratch']
  #allocation2 [shape = 'f32[16,128]{1,0:T(8,128)}', space=vmem, size = 0x2000, scoped, tag = 'scratch operand']
  %s0 = inlined_call_operand.hbm [shape: bf16[16,32], index: 0, kind: input, shape index: {}]
  %s1 = inlined_call_operand.hbm [shape: bf16[32,128], index: 1, kind: input, shape index: {}]
  %s2 = inlined_call_operand.vmem [shape: f32[1,128], index: 2, kind: input, shape index: {}]
  %s3 = inlined_call_operand.hbm [shape: f32[16,128], index: 3, kind: output, shape index: {}]
  %s4 = sld [smem:[#allocation0]]
  $region38: #{tpu_custom_call.1} parent=0
    _
  %s6 = ssub.s32 1, %s4
  %s7 = scalar_select 0, %s6, %s4
  $region1: #{tpu_custom_call.1} parent=0
    #allocation3 [shape = 'u8[4096]{0}', space=vmem, size = 0x1000, scoped, tag = 'input window, operand 0, single buffered']
    #allocation4 [shape = 's32[1]{0}', space=sflag, size = 0x4, scoped, tag = 'scoped memory for tpu_custom_call.1']
    #allocation5 [shape = 's32[1]{0}', space=sflag, size = 0x4, scoped, tag = 'scoped memory for tpu_custom_call.1']
    #allocation6 [shape = 'u8[8192]{0}', space=vmem, size = 0x2000, scoped, tag = 'input window, operand 1, single buffered']
    #allocation7 [shape = 's32[1]{0}', space=sflag, size = 0x4, scoped, tag = 'scoped memory for tpu_custom_call.1']
    #allocation8 [shape = 'u8[8192]{0}', space=vmem, size = 0x2000, scoped, tag = 'output window, operand 0, single buffered']
    %8 = vsyncpa [#allocation4], 0
    %9 = vsyncpa [#allocation7], 0
    %10 = vsyncpa [#allocation5], 0
    // Predicated region
    $region2: #{tpu_custom_call.1} parent=1 // pred_check
      _
    $region3: #{tpu_custom_call.1} parent=1 // pred_check_branch
      %12 = sbr.rel (0) target = $region5
    $region4: #{tpu_custom_call.1} parent=1 // pred_region
      %14 = vsyncadd [#allocation4], 0
      %s15 = sshll.u32 %s0, 4
      %s16 = int_to_ptr.hbm [resolvable:$true] %s15
      %s17 = sshll.u32 [#allocation3], 4
      %s18 = int_to_ptr.vmem [resolvable:$true] %s17
      %23 = dma.hbm_to_vmem [thread:$0]  %s16, 128, %s18, [#allocation4], 64, 64, 4
    $region5: #{tpu_custom_call.1} parent=1 // pred_fallthru
      _
    // Predicated region
    $region6: #{tpu_custom_call.1} parent=1 // pred_check
      _
    $region7: #{tpu_custom_call.1} parent=1 // pred_check_branch
      %25 = sbr.rel (0) target = $region9
    $region8: #{tpu_custom_call.1} parent=1 // pred_region
      %27 = vsyncadd [#allocation7], 0
      %s28 = sshll.u32 %s1, 4
      %s29 = int_to_ptr.hbm [resolvable:$true] %s28
      %s30 = sshll.u32 [#allocation6], 4
      %s31 = int_to_ptr.vmem [resolvable:$true] %s30
      %36 = dma.hbm_to_vmem [thread:$0]  %s29, 256, %s31, [#allocation7], 64, 64, 4
    $region9: #{tpu_custom_call.1} parent=1 // pred_fallthru
      _
    // Predicated region
    $region10: #{tpu_custom_call.1} parent=1 // pred_check
      _
    $region11: #{tpu_custom_call.1} parent=1 // pred_check_branch
      %38 = sbr.rel (0) target = $region13
    $region12: #{tpu_custom_call.1} parent=1 // pred_region
      _
    $region13: #{tpu_custom_call.1} parent=1 // pred_fallthru
      _
    // Predicated region
    $region14: #{tpu_custom_call.1} parent=1 // pred_check
      _
    $region15: #{tpu_custom_call.1} parent=1 // pred_check_branch
      %40 = sbr.rel (0) target = $region17
    $region16: #{tpu_custom_call.1} parent=1 // pred_region
      %42 = dma.done [#allocation4], 128
    $region17: #{tpu_custom_call.1} parent=1 // pred_fallthru
      _
    // Predicated region
    $region18: #{tpu_custom_call.1} parent=1 // pred_check
      _
    $region19: #{tpu_custom_call.1} parent=1 // pred_check_branch
      %44 = sbr.rel (0) target = $region21
    $region20: #{tpu_custom_call.1} parent=1 // pred_region
      %46 = dma.done [#allocation7], 256
    $region21: #{tpu_custom_call.1} parent=1 // pred_fallthru
      _
    %p48 = scmp.eq.s32.totalorder 0, 0
    // Predicated region
    $region22: #{tpu_custom_call.1} parent=1 // pred_check
      %p49 = pneg %p48
    $region23: #{tpu_custom_call.1} parent=1 // pred_check_branch
      %51 = sbr.rel (%p49) target = $region25
    $region24: #{tpu_custom_call.1} parent=1 // pred_region
      %52 = vst [vmem:[#allocation2] sm:$0xff] 0.0
      %53 = vst [vmem:[#allocation2 + $0x8] sm:$0xff] 0.0
    $region25: #{tpu_custom_call.1} parent=1 // pred_fallthru
      _
    %v54 = vld [vmem:[#allocation2] sm:$0xff]
    %v55 = vld [vmem:[#allocation2 + $0x8] sm:$0xff]
    %v56 = vld [vmem:[#allocation3] sm:$0xf]
    %v57 = vld [vmem:[#allocation3 + $0x4] sm:$0xf]
    %v58 = vld [vmem:[#allocation6] sm:$0xf]
    %v59 = vld [vmem:[#allocation6 + $0x4] sm:$0xf]
    %v60 = vld [vmem:[#allocation6 + $0x8] sm:$0xf]
    %v61 = vld [vmem:[#allocation6 + $0xc] sm:$0xf]
    %v64 = vunpack.c.l.b16 %v56
    %v65 = vunpack.c.l.b16 %v57
    %v66 = vpack.c.b16 %v65, %v64
    %v71 = vunpack.c.l.b16 %v58
    %v72 = vunpack.c.l.b16 %v59
    %v73 = vunpack.c.l.b16 %v60
    %v74 = vunpack.c.l.b16 %v61
    %v75 = vpack.c.b16 %v72, %v71
    %v76 = vpack.c.b16 %v74, %v73
    %vm79 = vcmask 261120
    %v81 = vsel %vm79, %v66, 0
    %83 = vmatpush.bf16.msra.mxu0 0
    %84 = vmatpush.bf16.msra.mxu0 0
    %85 = vmatpush.bf16.msra.mxu0 0
    %86 = vmatpush.bf16.msra.mxu0 0
    %87 = vmatpush.bf16.msra.mxu0 0
    %88 = vmatpush.bf16.msra.mxu0 0
    %89 = vmatpush.bf16.msra.mxu0 %v76
    %90 = vmatpush.bf16.msra.mxu0 %v75
    %91 = vmatmul.bf16.gmra.mxu0 %v81
    %v92 = vpop.f32.mrf.mxu0
    %v93 = vadd.f32 0.0, %v92
    %v94 = vpop.f32.mrf.mxu0
    %v95 = vadd.f32 0.0, %v94
    %96 = vdwg.mxu0
    %v97 = vadd.f32 %v54, %v93
    %v98 = vadd.f32 %v55, %v95
    %99 = vst [vmem:[#allocation2] sm:$0xff] %v97
    %100 = vst [vmem:[#allocation2 + $0x8] sm:$0xff] %v98
    // Predicated region
    $region26: #{tpu_custom_call.1} parent=1 // pred_check
      %p101 = pneg %p48
    $region27: #{tpu_custom_call.1} parent=1 // pred_check_branch
      %103 = sbr.rel (%p101) target = $region29
    $region28: #{tpu_custom_call.1} parent=1 // pred_region
      %v104 = vld [vmem:[#allocation2] sm:$0xff]
      %v105 = vld [vmem:[#allocation2 + $0x8] sm:$0xff]
      %v106 = vld [vmem:[%s2] sm:$0x1]
      %v108 = vperm.slane %v106, 0
      %v110 = vadd.f32 %v104, %v108
      %v111 = vadd.f32 %v105, %v108
      %112 = vst [vmem:[#allocation8] sm:$0xff] %v110
      %113 = vst [vmem:[#allocation8 + $0x8] sm:$0xff] %v111
    $region29: #{tpu_custom_call.1} parent=1 // pred_fallthru
      _
    // Predicated region
    $region30: #{tpu_custom_call.1} parent=1 // pred_check
      _
    $region31: #{tpu_custom_call.1} parent=1 // pred_check_branch
      %115 = sbr.rel (0) target = $region33
    $region32: #{tpu_custom_call.1} parent=1 // pred_region
      %117 = vsyncadd [#allocation5], 0
      %s118 = sshll.u32 [#allocation8], 4
      %s119 = int_to_ptr.vmem [resolvable:$true] %s118
      %s120 = sshll.u32 %s3, 4
      %s121 = int_to_ptr.hbm [resolvable:$true] %s120
      %126 = dma.vmem_to_hbm [thread:$0]  %s119, 256, %s121, [#allocation5], 128, 128, 8
    $region33: #{tpu_custom_call.1} parent=1 // pred_fallthru
      _
    // Predicated region
    $region34: #{tpu_custom_call.1} parent=1 // pred_check
      _
    $region35: #{tpu_custom_call.1} parent=1 // pred_check_branch
      %128 = sbr.rel (0) target = $region37
    $region36: #{tpu_custom_call.1} parent=1 // pred_region
      %130 = dma.done [#allocation5], 256
    $region37: #{tpu_custom_call.1} parent=1 // pred_fallthru
      _
    %131 = vsyncpa [#allocation4], 1
    %132 = vsyncpa [#allocation7], 1
    %133 = vsyncpa [#allocation5], 1

</llo_original>
